<compile_context>
chip_gen: v6e
topology: v6e:2x2x1
jax: 0.10.0
libtpu: 0.0.40
codegen_flags: <defaults>
</compile_context>

<pallas_src>
import jax
import jax.numpy as jnp
from jax.experimental import pallas as pl
from jax.experimental.pallas import tpu as pltpu

LANE = 128  # TPU lane width; all feature dims padded to this.


def cost_ae_kernel(x_ref, w_ref, b_ref, y_ref):
    """x_ref: (TM,128); w_ref: (4,128,128) packed weights; b_ref: (8,128) packed biases."""
    x = x_ref[...]

    # layer 0: encoder input + ReLU
    h = jnp.dot(x, w_ref[0], preferred_element_type=jnp.float32) + b_ref[0:1, :]
    h = jnp.maximum(h, 0.0)

    # layer 1: fused (en_hid ; en_z) + ReLU
    z = jnp.dot(h, w_ref[1], preferred_element_type=jnp.float32) + b_ref[1:2, :]
    z = jnp.maximum(z, 0.0)

    # layer 2: decoder z + ReLU
    h = jnp.dot(z, w_ref[2], preferred_element_type=jnp.float32) + b_ref[2:3, :]
    h = jnp.maximum(h, 0.0)

    # layer 3: fused (en_hid reused ; out), no activation
    y_ref[...] = jnp.dot(h, w_ref[3], preferred_element_type=jnp.float32) + b_ref[3:4, :]


def pack_params(p):
    """Fuse activation-free layer pairs and zero-pad everything to 128 lanes.

    Done once per parameter set, outside the per-call path (weight residency is
    amortized across all forward calls that reuse the packed slabs).
    """
    # offline algebraic fusion (exact up to f32 rounding order)
    w_ez2 = p["w_enh"] @ p["w_enz"]
    b_ez2 = p["b_enh"] @ p["w_enz"] + p["b_enz"]
    w_out2 = p["w_enh"] @ p["w_out"]
    b_out2 = p["b_enh"] @ p["w_out"] + p["b_out"]

    def pad_w(w):
        r, c = w.shape
        return jnp.zeros((LANE, LANE), jnp.float32).at[:r, :c].set(w.astype(jnp.float32))

    w_slab = jnp.stack(
        [pad_w(p["w_in"]), pad_w(w_ez2), pad_w(p["w_dez"]), pad_w(w_out2)]
    )  # (4, 128, 128)

    b_slab = jnp.zeros((8, LANE), jnp.float32)
    for i, b in enumerate((p["b_in"], b_ez2, p["b_dez"], b_out2)):
        b = b.reshape(-1).astype(jnp.float32)
        b_slab = b_slab.at[i, : b.shape[0]].set(b)  # (8, 128); rows 4..7 unused

    return w_slab, b_slab


def cost_ae_forward(x, w_slab, b_slab, in_dim):
    """x: (B, in_dim) f32; w_slab/b_slab from pack_params. Returns (B, in_dim) f32."""
    B = x.shape[0]
    # Batch tile: 128 rows for large batches (v5e/v6e/v7x MXU geometry),
    # otherwise the smallest multiple of 8 that covers B.
    tm = LANE if B >= LANE else max(8, ((B + 7) // 8) * 8)
    b_pad = ((B + tm - 1) // tm) * tm

    # lane-dense, zero-padded input
    x_pad = jnp.zeros((b_pad, LANE), jnp.float32).at[:B, :in_dim].set(x.astype(jnp.float32))

    y_pad = pl.pallas_call(
        cost_ae_kernel,
        out_shape=jax.ShapeDtypeStruct((b_pad, LANE), jnp.float32),
        grid_spec=pltpu.PrefetchScalarGridSpec(
            num_scalar_prefetch=0,
            grid=(b_pad // tm,),
            in_specs=[
                pl.BlockSpec((tm, LANE), lambda i: (i, 0)),        # x tile (pipelined)
                pl.BlockSpec((4, LANE, LANE), lambda i: (0, 0, 0)),  # weights, VMEM-resident
                pl.BlockSpec((8, LANE), lambda i: (0, 0)),           # biases, VMEM-resident
            ],
            out_specs=pl.BlockSpec((tm, LANE), lambda i: (i, 0)),
        ),
        compiler_params=pltpu.CompilerParams(
            dimension_semantics=("parallel",),
        ),
    )(x_pad, w_slab, b_slab)

    return y_pad[:B, :in_dim]


def init_params(key, in_dim, hid_dim, z_dim):
    """Deterministic synthetic parameter init (not a checkpoint load).

    Weights are stored as (in_features, out_features) so the math is x @ W + b
    (equivalent to PyTorch's Linear with W given directly in transposed form).
    """
    ks = jax.random.split(key, 10)

    def lin(kw, kb, fan_in, fan_out):
        scale = 1.0 / jnp.sqrt(jnp.float32(fan_in))
        w = jax.random.uniform(kw, (fan_in, fan_out), jnp.float32, -scale, scale)
        b = jax.random.uniform(kb, (1, fan_out), jnp.float32, -scale, scale)
        return w, b

    w_in, b_in = lin(ks[0], ks[1], in_dim, hid_dim)
    w_enh, b_enh = lin(ks[2], ks[3], hid_dim, hid_dim)
    w_enz, b_enz = lin(ks[4], ks[5], hid_dim, z_dim)
    w_dez, b_dez = lin(ks[6], ks[7], z_dim, hid_dim)
    # de_hid_layer exists in __init__ but is never used in forward; omitted on purpose.
    w_out, b_out = lin(ks[8], ks[9], hid_dim, in_dim)
    return dict(w_in=w_in, b_in=b_in, w_enh=w_enh, b_enh=b_enh,
                w_enz=w_enz, b_enz=b_enz, w_dez=w_dez, b_dez=b_dez,
                w_out=w_out, b_out=b_out)


def reference_forward(x, p):
    """Unfused, unpadded reference matching the PyTorch forward exactly."""
    h = jnp.maximum(x @ p["w_in"] + p["b_in"], 0.0)
    h = h @ p["w_enh"] + p["b_enh"]
    z = jnp.maximum(h @ p["w_enz"] + p["b_enz"], 0.0)
    h = jnp.maximum(z @ p["w_dez"] + p["b_dez"], 0.0)
    h = h @ p["w_enh"] + p["b_enh"]
    return h @ p["w_out"] + p["b_out"]


if __name__ == "__main__":
    # Module hyper-params (consistent with __init__ defaults):
    type1_kind_num = 4
    type2_kind_num = 4
    word_id_bit_num = 16
    phase_num = 4
    hid_dim = 64
    z_dim = 16
    in_dim = (word_id_bit_num + type1_kind_num + type2_kind_num) * phase_num  # 96
    batch = 8

    key = jax.random.PRNGKey(0)
    kx, kp = jax.random.split(key)
    x = jax.random.normal(kx, (batch, in_dim), jnp.float32)
    params = init_params(kp, in_dim, hid_dim, z_dim)

    # Pack (fuse + pad) once; reuse across calls.
    w_slab, b_slab = pack_params(params)
    w_slab, b_slab = jax.block_until_ready((w_slab, b_slab))

    y = cost_ae_forward(x, w_slab, b_slab, in_dim)
    y = jax.block_until_ready(y)

    y_ref = reference_forward(x, params)
    assert y.shape == (batch, in_dim)
    assert jnp.allclose(y, y_ref, atol=1e-4, rtol=1e-4)

    print("KERNEL_OK")
</pallas_src>

<mosaic_0001>
module attributes {stable_mosaic.version = 11 : i64} {
  func.func @cost_ae_kernel(%arg0: i32, %arg1: memref<8x128xf32, #tpu.memory_space<vmem>>, %arg2: memref<4x128x128xf32, #tpu.memory_space<vmem>>, %arg3: memref<8x128xf32, #tpu.memory_space<vmem>>, %arg4: memref<8x128xf32, #tpu.memory_space<vmem>>) attributes {dimension_semantics = [#tpu.dimension_semantics<parallel>], iteration_bounds = array<i64: 1>, scalar_prefetch = 0 : i64, scratch_operands = 0 : i64, tpu.core_type = #tpu.core_type<tc>, window_params = [{transform_indices = @transform_0, window_bounds = array<i64: 8, 128>}, {pipeline_mode = #tpu.pipeline_mode<synchronous>, transform_indices = @transform_1, window_bounds = array<i64: 4, 128, 128>}, {pipeline_mode = #tpu.pipeline_mode<synchronous>, transform_indices = @transform_2, window_bounds = array<i64: 8, 128>}, {transform_indices = @transform_3, window_bounds = array<i64: 8, 128>}]} {
    %c0 = arith.constant 0 : index
    %c0_0 = arith.constant 0 : index
    %0 = vector.load %arg1[%c0, %c0_0] : memref<8x128xf32, #tpu.memory_space<vmem>>, vector<8x128xf32>
    %c0_1 = arith.constant 0 : index
    %c0_2 = arith.constant 0 : index
    %c0_3 = arith.constant 0 : index
    %1 = vector.load %arg2[%c0_1, %c0_2, %c0_3] : memref<4x128x128xf32, #tpu.memory_space<vmem>>, vector<1x128x128xf32>
    %2 = vector.shape_cast %1 : vector<1x128x128xf32> to vector<128x128xf32>
    %cst = arith.constant dense<0.000000e+00> : vector<8x128xf32>
    %3 = tpu.matmul %0, %2, %cst {dimension_numbers = #tpu.dot_dimension_numbers<[1], [0], [0], [1], [0, 0, 1, 1], [], []>} : vector<8x128xf32>, vector<128x128xf32>, vector<8x128xf32> -> vector<8x128xf32>
    %c0_4 = arith.constant 0 : index
    %c0_5 = arith.constant 0 : index
    %4 = vector.load %arg3[%c0_4, %c0_5] : memref<8x128xf32, #tpu.memory_space<vmem>>, vector<1x128xf32>
    %5 = vector.broadcast %4 : vector<1x128xf32> to vector<8x128xf32>
    %6 = arith.addf %3, %5 : vector<8x128xf32>
    %cst_6 = arith.constant 0.000000e+00 : f32
    %7 = vector.broadcast %cst_6 : f32 to vector<8x128xf32>
    %8 = arith.maximumf %6, %7 : vector<8x128xf32>
    %c1 = arith.constant 1 : index
    %c0_7 = arith.constant 0 : index
    %c0_8 = arith.constant 0 : index
    %9 = vector.load %arg2[%c1, %c0_7, %c0_8] : memref<4x128x128xf32, #tpu.memory_space<vmem>>, vector<1x128x128xf32>
    %10 = vector.shape_cast %9 : vector<1x128x128xf32> to vector<128x128xf32>
    %cst_9 = arith.constant dense<0.000000e+00> : vector<8x128xf32>
    %11 = tpu.matmul %8, %10, %cst_9 {dimension_numbers = #tpu.dot_dimension_numbers<[1], [0], [0], [1], [0, 0, 1, 1], [], []>} : vector<8x128xf32>, vector<128x128xf32>, vector<8x128xf32> -> vector<8x128xf32>
    %c1_10 = arith.constant 1 : index
    %c0_11 = arith.constant 0 : index
    %12 = vector.load %arg3[%c1_10, %c0_11] : memref<8x128xf32, #tpu.memory_space<vmem>>, vector<1x128xf32>
    %13 = vector.broadcast %12 : vector<1x128xf32> to vector<8x128xf32>
    %14 = arith.addf %11, %13 : vector<8x128xf32>
    %cst_12 = arith.constant 0.000000e+00 : f32
    %15 = vector.broadcast %cst_12 : f32 to vector<8x128xf32>
    %16 = arith.maximumf %14, %15 : vector<8x128xf32>
    %c2 = arith.constant 2 : index
    %c0_13 = arith.constant 0 : index
    %c0_14 = arith.constant 0 : index
    %17 = vector.load %arg2[%c2, %c0_13, %c0_14] : memref<4x128x128xf32, #tpu.memory_space<vmem>>, vector<1x128x128xf32>
    %18 = vector.shape_cast %17 : vector<1x128x128xf32> to vector<128x128xf32>
    %cst_15 = arith.constant dense<0.000000e+00> : vector<8x128xf32>
    %19 = tpu.matmul %16, %18, %cst_15 {dimension_numbers = #tpu.dot_dimension_numbers<[1], [0], [0], [1], [0, 0, 1, 1], [], []>} : vector<8x128xf32>, vector<128x128xf32>, vector<8x128xf32> -> vector<8x128xf32>
    %c2_16 = arith.constant 2 : index
    %c0_17 = arith.constant 0 : index
    %20 = vector.load %arg3[%c2_16, %c0_17] : memref<8x128xf32, #tpu.memory_space<vmem>>, vector<1x128xf32>
    %21 = vector.broadcast %20 : vector<1x128xf32> to vector<8x128xf32>
    %22 = arith.addf %19, %21 : vector<8x128xf32>
    %cst_18 = arith.constant 0.000000e+00 : f32
    %23 = vector.broadcast %cst_18 : f32 to vector<8x128xf32>
    %24 = arith.maximumf %22, %23 : vector<8x128xf32>
    %c3 = arith.constant 3 : index
    %c0_19 = arith.constant 0 : index
    %c0_20 = arith.constant 0 : index
    %25 = vector.load %arg2[%c3, %c0_19, %c0_20] : memref<4x128x128xf32, #tpu.memory_space<vmem>>, vector<1x128x128xf32>
    %26 = vector.shape_cast %25 : vector<1x128x128xf32> to vector<128x128xf32>
    %cst_21 = arith.constant dense<0.000000e+00> : vector<8x128xf32>
    %27 = tpu.matmul %24, %26, %cst_21 {dimension_numbers = #tpu.dot_dimension_numbers<[1], [0], [0], [1], [0, 0, 1, 1], [], []>} : vector<8x128xf32>, vector<128x128xf32>, vector<8x128xf32> -> vector<8x128xf32>
    %c3_22 = arith.constant 3 : index
    %c0_23 = arith.constant 0 : index
    %28 = vector.load %arg3[%c3_22, %c0_23] : memref<8x128xf32, #tpu.memory_space<vmem>>, vector<1x128xf32>
    %29 = vector.broadcast %28 : vector<1x128xf32> to vector<8x128xf32>
    %30 = arith.addf %27, %29 : vector<8x128xf32>
    %c0_24 = arith.constant 0 : index
    %c0_25 = arith.constant 0 : index
    %31 = vector.load %arg4[%c0_24, %c0_25] : memref<8x128xf32, #tpu.memory_space<vmem>>, vector<8x128xf32>
    tpu.vector_store %arg4[%c0_24, %c0_25], %30 {strides = array<i32>} : memref<8x128xf32, #tpu.memory_space<vmem>>, vector<8x128xf32>,
    return
  }
  func.func @transform_0(%arg0: i32) -> (i32, i32) {
    %c0_i32 = arith.constant 0 : i32
    %c0_i32_0 = arith.constant 0 : i32
    return %arg0, %c0_i32 : i32, i32
  }
  func.func @transform_1(%arg0: i32) -> (i32, i32, i32) {
    %c0_i32 = arith.constant 0 : i32
    %c0_i32_0 = arith.constant 0 : i32
    %c0_i32_1 = arith.constant 0 : i32
    %c0_i32_2 = arith.constant 0 : i32
    return %c0_i32, %c0_i32_0, %c0_i32_1 : i32, i32, i32
  }
  func.func @transform_2(%arg0: i32) -> (i32, i32) {
    %c0_i32 = arith.constant 0 : i32
    %c0_i32_0 = arith.constant 0 : i32
    %c0_i32_1 = arith.constant 0 : i32
    return %c0_i32, %c0_i32_0 : i32, i32
  }
  func.func @transform_3(%arg0: i32) -> (i32, i32) {
    %c0_i32 = arith.constant 0 : i32
    %c0_i32_0 = arith.constant 0 : i32
    return %arg0, %c0_i32 : i32, i32
  }
}

</mosaic_0001>

<llo_original>
// kernel: tpu_custom_call.1
$region0: #{tpu_custom_call.1}
  #allocation0 [shape = 'u32[]', space=smem, size = 0x4, offset = 0x4, fixed_abs, tag = 'smem constant byte address 0x4 - core index']
  #allocation1 [shape = 'u32[144,128]{1,0:T(1,128)}', space=vmem, size = 0x12000, scoped, tag = 'internal scratch']
  %s0 = inlined_call_operand.hbm [shape: f32[8,128], index: 0, kind: input, shape index: {}]
  %s1 = inlined_call_operand.hbm [shape: f32[4,128,128], index: 1, kind: input, shape index: {}]
  %s2 = inlined_call_operand.hbm [shape: f32[8,128], index: 2, kind: input, shape index: {}]
  %s3 = inlined_call_operand.hbm [shape: f32[8,128], index: 3, kind: output, shape index: {}]
  %s4 = sld [smem:[#allocation0]]
  $region34: #{tpu_custom_call.1} parent=0
    _
  %s6 = ssub.s32 1, %s4
  %s7 = scalar_select 0, %s6, %s4
  $region1: #{tpu_custom_call.1} parent=0
    #allocation2 [shape = 'u8[4096]{0}', space=vmem, size = 0x1000, scoped, tag = 'input window, operand 0, single buffered']
    #allocation3 [shape = 's32[1]{0}', space=sflag, size = 0x4, scoped, tag = 'scoped memory for tpu_custom_call.1']
    #allocation4 [shape = 's32[1]{0}', space=sflag, size = 0x4, scoped, tag = 'scoped memory for tpu_custom_call.1']
    #allocation5 [shape = 'u8[262144]{0}', space=vmem, size = 0x40000, scoped, tag = 'input window, operand 1, single buffered']
    #allocation6 [shape = 's32[1]{0}', space=sflag, size = 0x4, scoped, tag = 'scoped memory for tpu_custom_call.1']
    #allocation7 [shape = 'u8[4096]{0}', space=vmem, size = 0x1000, scoped, tag = 'input window, operand 2, single buffered']
    #allocation8 [shape = 'u8[4096]{0}', space=vmem, size = 0x1000, scoped, tag = 'output window, operand 0, single buffered']
    %8 = vsyncpa [#allocation3], 0
    %9 = vsyncpa [#allocation6], 0
    %10 = vsyncpa [#allocation4], 0
    // Predicated region
    $region2: #{tpu_custom_call.1} parent=1 // pred_check
      _
    $region3: #{tpu_custom_call.1} parent=1 // pred_check_branch
      %12 = sbr.rel (0) target = $region5
    $region4: #{tpu_custom_call.1} parent=1 // pred_region
      %s14 = ssub.s32 128, 128
      %15 = vsyncadd [#allocation3], %s14
      %s17 = sshll.u32 [#allocation2], 4
      %s18 = int_to_ptr.vmem [resolvable:$true] %s17
      %20 = dma.hbm_to_vmem [thread:$0]  %s0, 128, %s18, [#allocation3]
    $region5: #{tpu_custom_call.1} parent=1 // pred_fallthru
      _
    // Predicated region
    $region6: #{tpu_custom_call.1} parent=1 // pred_check
      _
    $region7: #{tpu_custom_call.1} parent=1 // pred_check_branch
      %22 = sbr.rel (0) target = $region9
    $region8: #{tpu_custom_call.1} parent=1 // pred_region
      %s24 = ssub.s32 8192, 8192
      %25 = vsyncadd [#allocation6], %s24
      %s26 = sshll.u32 [#allocation5], 4
      %s27 = int_to_ptr.vmem [resolvable:$true] %s26
      %32 = dma.hbm_to_vmem [thread:$0]  %s1, 8192, %s27, [#allocation6], 128, 128, 8
    $region9: #{tpu_custom_call.1} parent=1 // pred_fallthru
      _
    // Predicated region
    $region10: #{tpu_custom_call.1} parent=1 // pred_check
      _
    $region11: #{tpu_custom_call.1} parent=1 // pred_check_branch
      %34 = sbr.rel (0) target = $region13
    $region12: #{tpu_custom_call.1} parent=1 // pred_region
      %s36 = ssub.s32 128, 128
      %37 = vsyncadd [#allocation6], %s36
      %s39 = sshll.u32 [#allocation7], 4
      %s40 = int_to_ptr.vmem [resolvable:$true] %s39
      %42 = dma.hbm_to_vmem [thread:$0]  %s2, 128, %s40, [#allocation6]
    $region13: #{tpu_custom_call.1} parent=1 // pred_fallthru
      _
    // Predicated region
    $region14: #{tpu_custom_call.1} parent=1 // pred_check
      _
    $region15: #{tpu_custom_call.1} parent=1 // pred_check_branch
      %44 = sbr.rel (0) target = $region17
    $region16: #{tpu_custom_call.1} parent=1 // pred_region
      %45 = dma.done [#allocation3], 128
    $region17: #{tpu_custom_call.1} parent=1 // pred_fallthru
      _
    // Predicated region
    $region18: #{tpu_custom_call.1} parent=1 // pred_check
      _
    $region19: #{tpu_custom_call.1} parent=1 // pred_check_branch
      %47 = sbr.rel (0) target = $region21
    $region20: #{tpu_custom_call.1} parent=1 // pred_region
      %48 = dma.done [#allocation6], 8192
    $region21: #{tpu_custom_call.1} parent=1 // pred_fallthru
      _
    // Predicated region
    $region22: #{tpu_custom_call.1} parent=1 // pred_check
      _
    $region23: #{tpu_custom_call.1} parent=1 // pred_check_branch
      %50 = sbr.rel (0) target = $region25
    $region24: #{tpu_custom_call.1} parent=1 // pred_region
      %51 = dma.done [#allocation6], 128
    $region25: #{tpu_custom_call.1} parent=1 // pred_fallthru
      _
    %v52 = vld [vmem:[#allocation2] sm:$0xff]
    %v53 = vld [vmem:[#allocation5] sm:$0xff]
    %v54 = vld [vmem:[#allocation5 + $0x8] sm:$0xff]
    %v55 = vld [vmem:[#allocation5 + $0x10] sm:$0xff]
    %v56 = vld [vmem:[#allocation5 + $0x18] sm:$0xff]
    %v57 = vld [vmem:[#allocation5 + $0x20] sm:$0xff]
    %v58 = vld [vmem:[#allocation5 + $0x28] sm:$0xff]
    %v59 = vld [vmem:[#allocation5 + $0x30] sm:$0xff]
    %v60 = vld [vmem:[#allocation5 + $0x38] sm:$0xff]
    %v61 = vld [vmem:[#allocation5 + $0x40] sm:$0xff]
    %v62 = vld [vmem:[#allocation5 + $0x48] sm:$0xff]
    %v63 = vld [vmem:[#allocation5 + $0x50] sm:$0xff]
    %v64 = vld [vmem:[#allocation5 + $0x58] sm:$0xff]
    %v65 = vld [vmem:[#allocation5 + $0x60] sm:$0xff]
    %v66 = vld [vmem:[#allocation5 + $0x68] sm:$0xff]
    %v67 = vld [vmem:[#allocation5 + $0x70] sm:$0xff]
    %v68 = vld [vmem:[#allocation5 + $0x78] sm:$0xff]
    %v69 = vld [vmem:[#allocation7] sm:$0x1]
    %v70 = vlaneseq
    %v71 = vshrl.u32 %v70, 7
    %v72 = vsub.s32 0, %v71
    %v73 = vrot.slane %v69, %v72
    %74 = vmatprep.subr.mxu0 0.0
    %75 = vmatpush1.msra.mxu0 %v68
    %76 = vmatprep.subr.mxu0 0.0
    %77 = vmatpush1.msra.mxu0 %v67
    %78 = vmatprep.subr.mxu0 0.0
    %79 = vmatpush1.msra.mxu0 %v66
    %80 = vmatprep.subr.mxu0 0.0
    %81 = vmatpush1.msra.mxu0 %v65
    %82 = vmatprep.subr.mxu0 0.0
    %83 = vmatpush1.msra.mxu0 %v64
    %84 = vmatprep.subr.mxu0 0.0
    %85 = vmatpush1.msra.mxu0 %v63
    %86 = vmatprep.subr.mxu0 0.0
    %87 = vmatpush1.msra.mxu0 %v62
    %88 = vmatprep.subr.mxu0 0.0
    %89 = vmatpush1.msra.mxu0 %v61
    %90 = vmatprep.subr.mxu0 0.0
    %91 = vmatpush1.msra.mxu0 %v60
    %92 = vmatprep.subr.mxu0 0.0
    %93 = vmatpush1.msra.mxu0 %v59
    %94 = vmatprep.subr.mxu0 0.0
    %95 = vmatpush1.msra.mxu0 %v58
    %96 = vmatprep.subr.mxu0 0.0
    %97 = vmatpush1.msra.mxu0 %v57
    %98 = vmatprep.subr.mxu0 0.0
    %99 = vmatpush1.msra.mxu0 %v56
    %100 = vmatprep.subr.mxu0 0.0
    %101 = vmatpush1.msra.mxu0 %v55
    %102 = vmatprep.subr.mxu0 0.0
    %103 = vmatpush1.msra.mxu0 %v54
    %104 = vmatprep.subr.mxu0 0.0
    %105 = vmatpush1.msra.mxu0 %v53
    %106 = vmatprep.subr.mxu0 0.0
    %107 = vmatpush2.msra.mxu0 0.0
    %108 = vmatprep.subr.mxu0 0.0
    %109 = vmatpush2.msra.mxu0 0.0
    %110 = vmatprep.subr.mxu0 0.0
    %111 = vmatpush2.msra.mxu0 0.0
    %112 = vmatprep.subr.mxu0 0.0
    %113 = vmatpush2.msra.mxu0 0.0
    %114 = vmatprep.subr.mxu0 0.0
    %115 = vmatpush2.msra.mxu0 0.0
    %116 = vmatprep.subr.mxu0 0.0
    %117 = vmatpush2.msra.mxu0 0.0
    %118 = vmatprep.subr.mxu0 0.0
    %119 = vmatpush2.msra.mxu0 0.0
    %120 = vmatprep.subr.mxu0 0.0
    %121 = vmatpush2.msra.mxu0 0.0
    %122 = vmatprep.subr.mxu0 0.0
    %123 = vmatpush2.msra.mxu0 0.0
    %124 = vmatprep.subr.mxu0 0.0
    %125 = vmatpush2.msra.mxu0 0.0
    %126 = vmatprep.subr.mxu0 0.0
    %127 = vmatpush2.msra.mxu0 0.0
    %128 = vmatprep.subr.mxu0 0.0
    %129 = vmatpush2.msra.mxu0 0.0
    %130 = vmatprep.subr.mxu0 0.0
    %131 = vmatpush2.msra.mxu0 0.0
    %132 = vmatprep.subr.mxu0 0.0
    %133 = vmatpush2.msra.mxu0 0.0
    %134 = vmatprep.subr.mxu0 0.0
    %135 = vmatpush2.msra.mxu0 0.0
    %136 = vmatprep.subr.mxu0 0.0
    %137 = vmatpush2.msra.mxu0 0.0
    %138 = vmatprep.mubr.f32.mxu0 0.0
    %139 = vmatmul.mubr.f32.gmra.mxu0 %v52
    %v140 = vpop.f32.mrf.mxu0
    %v141 = vadd.f32 %v73, %v140
    %v142 = vpop.f32.mrf.mxu0
    %143 = vdwg.mxu0
    %v144 = vmax.f32 %v141, 0.0
    %s145 = scalar_lea.vmem [#allocation5], 128
    %v146 = vld [vmem:[%s145] sm:$0xff]
    %v147 = vld [vmem:[%s145 + $0x8] sm:$0xff]
    %v148 = vld [vmem:[%s145 + $0x10] sm:$0xff]
    %v149 = vld [vmem:[%s145 + $0x18] sm:$0xff]
    %v150 = vld [vmem:[%s145 + $0x20] sm:$0xff]
    %v151 = vld [vmem:[%s145 + $0x28] sm:$0xff]
    %v152 = vld [vmem:[%s145 + $0x30] sm:$0xff]
    %v153 = vld [vmem:[%s145 + $0x38] sm:$0xff]
    %v154 = vld [vmem:[%s145 + $0x40] sm:$0xff]
    %v155 = vld [vmem:[%s145 + $0x48] sm:$0xff]
    %v156 = vld [vmem:[%s145 + $0x50] sm:$0xff]
    %v157 = vld [vmem:[%s145 + $0x58] sm:$0xff]
    %v158 = vld [vmem:[%s145 + $0x60] sm:$0xff]
    %v159 = vld [vmem:[%s145 + $0x68] sm:$0xff]
    %v160 = vld [vmem:[%s145 + $0x70] sm:$0xff]
    %v161 = vld [vmem:[%s145 + $0x78] sm:$0xff]
    %v162 = vld [vmem:[#allocation7 + $0x1] sm:$0x1]
    %v163 = vlaneseq
    %v164 = vshrl.u32 %v163, 7
    %v165 = vsub.s32 0, %v164
    %v166 = vrot.slane %v162, %v165
    %167 = vmatprep.subr.mxu0 0.0
    %168 = vmatpush1.msra.mxu0 %v161
    %169 = vmatprep.subr.mxu0 0.0
    %170 = vmatpush1.msra.mxu0 %v160
    %171 = vmatprep.subr.mxu0 0.0
    %172 = vmatpush1.msra.mxu0 %v159
    %173 = vmatprep.subr.mxu0 0.0
    %174 = vmatpush1.msra.mxu0 %v158
    %175 = vmatprep.subr.mxu0 0.0
    %176 = vmatpush1.msra.mxu0 %v157
    %177 = vmatprep.subr.mxu0 0.0
    %178 = vmatpush1.msra.mxu0 %v156
    %179 = vmatprep.subr.mxu0 0.0
    %180 = vmatpush1.msra.mxu0 %v155
    %181 = vmatprep.subr.mxu0 0.0
    %182 = vmatpush1.msra.mxu0 %v154
    %183 = vmatprep.subr.mxu0 0.0
    %184 = vmatpush1.msra.mxu0 %v153
    %185 = vmatprep.subr.mxu0 0.0
    %186 = vmatpush1.msra.mxu0 %v152
    %187 = vmatprep.subr.mxu0 0.0
    %188 = vmatpush1.msra.mxu0 %v151
    %189 = vmatprep.subr.mxu0 0.0
    %190 = vmatpush1.msra.mxu0 %v150
    %191 = vmatprep.subr.mxu0 0.0
    %192 = vmatpush1.msra.mxu0 %v149
    %193 = vmatprep.subr.mxu0 0.0
    %194 = vmatpush1.msra.mxu0 %v148
    %195 = vmatprep.subr.mxu0 0.0
    %196 = vmatpush1.msra.mxu0 %v147
    %197 = vmatprep.subr.mxu0 0.0
    %198 = vmatpush1.msra.mxu0 %v146
    %199 = vmatprep.subr.mxu0 0.0
    %200 = vmatpush2.msra.mxu0 0.0
    %201 = vmatprep.subr.mxu0 0.0
    %202 = vmatpush2.msra.mxu0 0.0
    %203 = vmatprep.subr.mxu0 0.0
    %204 = vmatpush2.msra.mxu0 0.0
    %205 = vmatprep.subr.mxu0 0.0
    %206 = vmatpush2.msra.mxu0 0.0
    %207 = vmatprep.subr.mxu0 0.0
    %208 = vmatpush2.msra.mxu0 0.0
    %209 = vmatprep.subr.mxu0 0.0
    %210 = vmatpush2.msra.mxu0 0.0
    %211 = vmatprep.subr.mxu0 0.0
    %212 = vmatpush2.msra.mxu0 0.0
    %213 = vmatprep.subr.mxu0 0.0
    %214 = vmatpush2.msra.mxu0 0.0
    %215 = vmatprep.subr.mxu0 0.0
    %216 = vmatpush2.msra.mxu0 0.0
    %217 = vmatprep.subr.mxu0 0.0
    %218 = vmatpush2.msra.mxu0 0.0
    %219 = vmatprep.subr.mxu0 0.0
    %220 = vmatpush2.msra.mxu0 0.0
    %221 = vmatprep.subr.mxu0 0.0
    %222 = vmatpush2.msra.mxu0 0.0
    %223 = vmatprep.subr.mxu0 0.0
    %224 = vmatpush2.msra.mxu0 0.0
    %225 = vmatprep.subr.mxu0 0.0
    %226 = vmatpush2.msra.mxu0 0.0
    %227 = vmatprep.subr.mxu0 0.0
    %228 = vmatpush2.msra.mxu0 0.0
    %229 = vmatprep.subr.mxu0 0.0
    %230 = vmatpush2.msra.mxu0 0.0
    %231 = vmatprep.mubr.f32.mxu0 0.0
    %232 = vmatmul.mubr.f32.gmra.mxu0 %v144
    %v233 = vpop.f32.mrf.mxu0
    %v234 = vadd.f32 %v166, %v233
    %v235 = vpop.f32.mrf.mxu0
    %236 = vdwg.mxu0
    %v237 = vmax.f32 %v234, 0.0
    %s238 = scalar_lea.vmem [#allocation5], 256
    %v239 = vld [vmem:[%s238] sm:$0xff]
    %v240 = vld [vmem:[%s238 + $0x8] sm:$0xff]
    %v241 = vld [vmem:[%s238 + $0x10] sm:$0xff]
    %v242 = vld [vmem:[%s238 + $0x18] sm:$0xff]
    %v243 = vld [vmem:[%s238 + $0x20] sm:$0xff]
    %v244 = vld [vmem:[%s238 + $0x28] sm:$0xff]
    %v245 = vld [vmem:[%s238 + $0x30] sm:$0xff]
    %v246 = vld [vmem:[%s238 + $0x38] sm:$0xff]
    %v247 = vld [vmem:[%s238 + $0x40] sm:$0xff]
    %v248 = vld [vmem:[%s238 + $0x48] sm:$0xff]
    %v249 = vld [vmem:[%s238 + $0x50] sm:$0xff]
    %v250 = vld [vmem:[%s238 + $0x58] sm:$0xff]
    %v251 = vld [vmem:[%s238 + $0x60] sm:$0xff]
    %v252 = vld [vmem:[%s238 + $0x68] sm:$0xff]
    %v253 = vld [vmem:[%s238 + $0x70] sm:$0xff]
    %v254 = vld [vmem:[%s238 + $0x78] sm:$0xff]
    %v255 = vld [vmem:[#allocation7 + $0x2] sm:$0x1]
    %v256 = vlaneseq
    %v257 = vshrl.u32 %v256, 7
    %v258 = vsub.s32 0, %v257
    %v259 = vrot.slane %v255, %v258
    %260 = vmatprep.subr.mxu0 0.0
    %261 = vmatpush1.msra.mxu0 %v254
    %262 = vmatprep.subr.mxu0 0.0
    %263 = vmatpush1.msra.mxu0 %v253
    %264 = vmatprep.subr.mxu0 0.0
    %265 = vmatpush1.msra.mxu0 %v252
    %266 = vmatprep.subr.mxu0 0.0
    %267 = vmatpush1.msra.mxu0 %v251
    %268 = vmatprep.subr.mxu0 0.0
    %269 = vmatpush1.msra.mxu0 %v250
    %270 = vmatprep.subr.mxu0 0.0
    %271 = vmatpush1.msra.mxu0 %v249
    %272 = vmatprep.subr.mxu0 0.0
    %273 = vmatpush1.msra.mxu0 %v248
    %274 = vmatprep.subr.mxu0 0.0
    %275 = vmatpush1.msra.mxu0 %v247
    %276 = vmatprep.subr.mxu0 0.0
    %277 = vmatpush1.msra.mxu0 %v246
    %278 = vmatprep.subr.mxu0 0.0
    %279 = vmatpush1.msra.mxu0 %v245
    %280 = vmatprep.subr.mxu0 0.0
    %281 = vmatpush1.msra.mxu0 %v244
    %282 = vmatprep.subr.mxu0 0.0
    %283 = vmatpush1.msra.mxu0 %v243
    %284 = vmatprep.subr.mxu0 0.0
    %285 = vmatpush1.msra.mxu0 %v242
    %286 = vmatprep.subr.mxu0 0.0
    %287 = vmatpush1.msra.mxu0 %v241
    %288 = vmatprep.subr.mxu0 0.0
    %289 = vmatpush1.msra.mxu0 %v240
    %290 = vmatprep.subr.mxu0 0.0
    %291 = vmatpush1.msra.mxu0 %v239
    %292 = vmatprep.subr.mxu0 0.0
    %293 = vmatpush2.msra.mxu0 0.0
    %294 = vmatprep.subr.mxu0 0.0
    %295 = vmatpush2.msra.mxu0 0.0
    %296 = vmatprep.subr.mxu0 0.0
    %297 = vmatpush2.msra.mxu0 0.0
    %298 = vmatprep.subr.mxu0 0.0
    %299 = vmatpush2.msra.mxu0 0.0
    %300 = vmatprep.subr.mxu0 0.0
    %301 = vmatpush2.msra.mxu0 0.0
    %302 = vmatprep.subr.mxu0 0.0
    %303 = vmatpush2.msra.mxu0 0.0
    %304 = vmatprep.subr.mxu0 0.0
    %305 = vmatpush2.msra.mxu0 0.0
    %306 = vmatprep.subr.mxu0 0.0
    %307 = vmatpush2.msra.mxu0 0.0
    %308 = vmatprep.subr.mxu0 0.0
    %309 = vmatpush2.msra.mxu0 0.0
    %310 = vmatprep.subr.mxu0 0.0
    %311 = vmatpush2.msra.mxu0 0.0
    %312 = vmatprep.subr.mxu0 0.0
    %313 = vmatpush2.msra.mxu0 0.0
    %314 = vmatprep.subr.mxu0 0.0
    %315 = vmatpush2.msra.mxu0 0.0
    %316 = vmatprep.subr.mxu0 0.0
    %317 = vmatpush2.msra.mxu0 0.0
    %318 = vmatprep.subr.mxu0 0.0
    %319 = vmatpush2.msra.mxu0 0.0
    %320 = vmatprep.subr.mxu0 0.0
    %321 = vmatpush2.msra.mxu0 0.0
    %322 = vmatprep.subr.mxu0 0.0
    %323 = vmatpush2.msra.mxu0 0.0
    %324 = vmatprep.mubr.f32.mxu0 0.0
    %325 = vmatmul.mubr.f32.gmra.mxu0 %v237
    %v326 = vpop.f32.mrf.mxu0
    %v327 = vadd.f32 %v259, %v326
    %v328 = vpop.f32.mrf.mxu0
    %329 = vdwg.mxu0
    %v330 = vmax.f32 %v327, 0.0
    %s331 = scalar_lea.vmem [#allocation5], 384
    %v332 = vld [vmem:[%s331] sm:$0xff]
    %v333 = vld [vmem:[%s331 + $0x8] sm:$0xff]
    %v334 = vld [vmem:[%s331 + $0x10] sm:$0xff]
    %v335 = vld [vmem:[%s331 + $0x18] sm:$0xff]
    %v336 = vld [vmem:[%s331 + $0x20] sm:$0xff]
    %v337 = vld [vmem:[%s331 + $0x28] sm:$0xff]
    %v338 = vld [vmem:[%s331 + $0x30] sm:$0xff]
    %v339 = vld [vmem:[%s331 + $0x38] sm:$0xff]
    %v340 = vld [vmem:[%s331 + $0x40] sm:$0xff]
    %v341 = vld [vmem:[%s331 + $0x48] sm:$0xff]
    %v342 = vld [vmem:[%s331 + $0x50] sm:$0xff]
    %v343 = vld [vmem:[%s331 + $0x58] sm:$0xff]
    %v344 = vld [vmem:[%s331 + $0x60] sm:$0xff]
    %v345 = vld [vmem:[%s331 + $0x68] sm:$0xff]
    %v346 = vld [vmem:[%s331 + $0x70] sm:$0xff]
    %v347 = vld [vmem:[%s331 + $0x78] sm:$0xff]
    %v348 = vld [vmem:[#allocation7 + $0x3] sm:$0x1]
    %v349 = vlaneseq
    %v350 = vshrl.u32 %v349, 7
    %v351 = vsub.s32 0, %v350
    %v352 = vrot.slane %v348, %v351
    %353 = vmatprep.subr.mxu0 0.0
    %354 = vmatpush1.msra.mxu0 %v347
    %355 = vmatprep.subr.mxu0 0.0
    %356 = vmatpush1.msra.mxu0 %v346
    %357 = vmatprep.subr.mxu0 0.0
    %358 = vmatpush1.msra.mxu0 %v345
    %359 = vmatprep.subr.mxu0 0.0
    %360 = vmatpush1.msra.mxu0 %v344
    %361 = vmatprep.subr.mxu0 0.0
    %362 = vmatpush1.msra.mxu0 %v343
    %363 = vmatprep.subr.mxu0 0.0
    %364 = vmatpush1.msra.mxu0 %v342
    %365 = vmatprep.subr.mxu0 0.0
    %366 = vmatpush1.msra.mxu0 %v341
    %367 = vmatprep.subr.mxu0 0.0
    %368 = vmatpush1.msra.mxu0 %v340
    %369 = vmatprep.subr.mxu0 0.0
    %370 = vmatpush1.msra.mxu0 %v339
    %371 = vmatprep.subr.mxu0 0.0
    %372 = vmatpush1.msra.mxu0 %v338
    %373 = vmatprep.subr.mxu0 0.0
    %374 = vmatpush1.msra.mxu0 %v337
    %375 = vmatprep.subr.mxu0 0.0
    %376 = vmatpush1.msra.mxu0 %v336
    %377 = vmatprep.subr.mxu0 0.0
    %378 = vmatpush1.msra.mxu0 %v335
    %379 = vmatprep.subr.mxu0 0.0
    %380 = vmatpush1.msra.mxu0 %v334
    %381 = vmatprep.subr.mxu0 0.0
    %382 = vmatpush1.msra.mxu0 %v333
    %383 = vmatprep.subr.mxu0 0.0
    %384 = vmatpush1.msra.mxu0 %v332
    %385 = vmatprep.subr.mxu0 0.0
    %386 = vmatpush2.msra.mxu0 0.0
    %387 = vmatprep.subr.mxu0 0.0
    %388 = vmatpush2.msra.mxu0 0.0
    %389 = vmatprep.subr.mxu0 0.0
    %390 = vmatpush2.msra.mxu0 0.0
    %391 = vmatprep.subr.mxu0 0.0
    %392 = vmatpush2.msra.mxu0 0.0
    %393 = vmatprep.subr.mxu0 0.0
    %394 = vmatpush2.msra.mxu0 0.0
    %395 = vmatprep.subr.mxu0 0.0
    %396 = vmatpush2.msra.mxu0 0.0
    %397 = vmatprep.subr.mxu0 0.0
    %398 = vmatpush2.msra.mxu0 0.0
    %399 = vmatprep.subr.mxu0 0.0
    %400 = vmatpush2.msra.mxu0 0.0
    %401 = vmatprep.subr.mxu0 0.0
    %402 = vmatpush2.msra.mxu0 0.0
    %403 = vmatprep.subr.mxu0 0.0
    %404 = vmatpush2.msra.mxu0 0.0
    %405 = vmatprep.subr.mxu0 0.0
    %406 = vmatpush2.msra.mxu0 0.0
    %407 = vmatprep.subr.mxu0 0.0
    %408 = vmatpush2.msra.mxu0 0.0
    %409 = vmatprep.subr.mxu0 0.0
    %410 = vmatpush2.msra.mxu0 0.0
    %411 = vmatprep.subr.mxu0 0.0
    %412 = vmatpush2.msra.mxu0 0.0
    %413 = vmatprep.subr.mxu0 0.0
    %414 = vmatpush2.msra.mxu0 0.0
    %415 = vmatprep.subr.mxu0 0.0
    %416 = vmatpush2.msra.mxu0 0.0
    %417 = vmatprep.mubr.f32.mxu0 0.0
    %418 = vmatmul.mubr.f32.gmra.mxu0 %v330
    %v419 = vpop.f32.mrf.mxu0
    %v420 = vadd.f32 %v352, %v419
    %v421 = vpop.f32.mrf.mxu0
    %422 = vdwg.mxu0
    %423 = vst [vmem:[#allocation8] sm:$0xff] %v420
    // Predicated region
    $region26: #{tpu_custom_call.1} parent=1 // pred_check
      _
    $region27: #{tpu_custom_call.1} parent=1 // pred_check_branch
      %425 = sbr.rel (0) target = $region29
    $region28: #{tpu_custom_call.1} parent=1 // pred_region
      %s427 = ssub.s32 128, 128
      %428 = vsyncadd [#allocation4], %s427
      %s430 = sshll.u32 [#allocation8], 4
      %s431 = int_to_ptr.vmem [resolvable:$true] %s430
      %433 = dma.vmem_to_hbm [thread:$0]  %s431, 128, %s3, [#allocation4]
    $region29: #{tpu_custom_call.1} parent=1 // pred_fallthru
      _
    // Predicated region
    $region30: #{tpu_custom_call.1} parent=1 // pred_check
      _
    $region31: #{tpu_custom_call.1} parent=1 // pred_check_branch
      %435 = sbr.rel (0) target = $region33
    $region32: #{tpu_custom_call.1} parent=1 // pred_region
      %436 = dma.done [#allocation4], 128
    $region33: #{tpu_custom_call.1} parent=1 // pred_fallthru
      _
    %437 = vsyncpa [#allocation3], 1
    %438 = vsyncpa [#allocation6], 1
    %439 = vsyncpa [#allocation4], 1

</llo_original>
